<compile_context>
chip_gen: v6e
topology: v6e:2x2x1
jax: 0.10.0
libtpu: 0.0.40
codegen_flags: <defaults>
</compile_context>

<pallas_src>
import functools
from itertools import permutations

import numpy as np
import jax
import jax.numpy as jnp
from jax.experimental import pallas as pl
from jax.experimental.pallas import tpu as pltpu


def _round_up(x, m):
    return ((x + m - 1) // m) * m


def _device_defaults():
    """Per-chip P-tile cap, scoped-VMEM cap, and elementwise-dtype default."""
    try:
        kind = jax.devices()[0].device_kind.lower()
    except Exception:
        kind = ""
    if "v7" in kind:
        # 64 MiB physical VMEM per TensorCore: cap the tile, leave headroom.
        return dict(p_tile_cap=6272, vmem_cap=48 << 20, ew_bf16=True)
    if "v6" in kind:
        # 128 MiB VMEM + bf16 VPU/EUP: single full-P tile (12544 fits).
        return dict(p_tile_cap=16384, vmem_cap=96 << 20, ew_bf16=True)
    # v5e and older / unknown: 16 MiB default scoped VMEM (must be raised
    # explicitly for big tiles) and no bf16 VPU/EUP.
    return dict(p_tile_cap=6272, vmem_cap=96 << 20, ew_bf16=False)


def _vmem_limit_bytes(Qp, Tp, Pt, mm_bytes, vmem_cap):
    # double-buffered pipelined inputs/outputs + resident scratch + worst-case
    # f32 elementwise temporaries; 1.5x headroom, floor at 32 MiB.
    inputs = 2 * (Qp * Pt + Pt * Tp) * mm_bytes + 2 * (Qp * Tp + 8 * Tp) * 4
    outputs = 2 * Qp * Tp * 4
    scratch = (2 * Qp * Tp + 2 * Qp * 128) * 4
    interm = 5 * Qp * Pt * 4
    est = inputs + outputs + scratch + interm
    return int(max(32 << 20, min(vmem_cap, int(est * 1.5) + (4 << 20))))


# --------------------------------------------------------------------------
# Pallas kernel: pairwise cost matrix, grid = (batch, P-tile)
# --------------------------------------------------------------------------
def _cost_kernel(pred_ref, tgt_ref, ccls_ref, tsum_ref, out_ref,
                 acc_pt, acc_st, acc_ce, acc_s,
                 *, w_class, w_mask, w_dice, inv_points, ew_dtype):
    k = pl.program_id(1)

    @pl.when(k == 0)
    def _init():
        acc_pt[...] = jnp.zeros_like(acc_pt)
        acc_st[...] = jnp.zeros_like(acc_st)
        acc_ce[...] = jnp.zeros_like(acc_ce)
        acc_s[...] = jnp.zeros_like(acc_s)

    pred_lo = pred_ref[...]                 # (Qp, Pt)  MXU operand (bf16)
    tgt_lo = tgt_ref[...]                   # (Pt, Tp)  MXU operand (bf16)
    pred = pred_lo.astype(ew_dtype)         # elementwise dtype (bf16 on
                                            # v6e/v7x, f32 on v5e)

    # Two transcendentals per element (exp + log1p) + one approx vrcp:
    #   e = exp(-|x|);  softplus(x) = max(x,0) + log1p(e)
    #   sigmoid(x) = 1/(1+e)        if x >= 0
    #              = 1 - 1/(1+e)    otherwise
    e = jnp.exp(-jnp.abs(pred))
    ce = jnp.maximum(pred, 0.0) + jnp.log1p(e)                 # softplus(pred)
    r = pl.reciprocal(1.0 + e.astype(jnp.float32), approx=True)
    s = jnp.where(pred >= 0.0, r, 1.0 - r)                     # sigmoid(pred)

    acc_pt[...] += jnp.dot(pred_lo, tgt_lo, preferred_element_type=jnp.float32)
    acc_st[...] += jnp.dot(s.astype(tgt_lo.dtype), tgt_lo,
                           preferred_element_type=jnp.float32)
    acc_ce[...] += jnp.sum(ce.astype(jnp.float32), axis=-1, keepdims=True)
    acc_s[...] += jnp.sum(s, axis=-1, keepdims=True)

    @pl.when(k == pl.num_programs(1) - 1)
    def _finalize():
        # pairwise sigmoid BCE cost via the softplus identity
        cost_mask = (acc_ce[...] - acc_pt[...]) * inv_points       # (Qp, Tp)

        # pairwise dice cost (exact divide; this is off the P loop)
        denom = acc_s[...] + tsum_ref[...] + 1.0
        cost_dice = 1.0 - (2.0 * acc_st[...] + 1.0) / denom

        cost = (w_mask * cost_mask + w_class * ccls_ref[...]
                + w_dice * cost_dice)
        out_ref[...] = jnp.clip(cost, -1e10, 1e10)


def compute_cost_matrices(pred_pts, tgt_pts, class_logits, class_onehot,
                          cost_class=1.0, cost_mask=1.0, cost_dice=1.0,
                          p_tile=None, matmul_dtype=jnp.bfloat16,
                          elementwise_dtype=None):
    """Returns the (B, Q, T) Hungarian cost matrices."""
    B, Q, P = pred_pts.shape
    T = tgt_pts.shape[1]

    dflt = _device_defaults()
    p_tile_cap = int(p_tile) if p_tile is not None else dflt["p_tile_cap"]
    if elementwise_dtype is None:
        elementwise_dtype = jnp.bfloat16 if dflt["ew_bf16"] else jnp.float32

    mm_bytes = jnp.dtype(matmul_dtype).itemsize
    q_pack = {4: 8, 2: 16, 1: 32}.get(mm_bytes, 8)   # sublane pack of dtype
    Qp = _round_up(Q, q_pack)
    Tp = _round_up(T, 128)

    # P tiling: as few, as large tiles as the per-chip cap allows; tile size
    # is a multiple of 128 and chosen so total padding stays minimal.
    Pp0 = _round_up(P, 128)
    if Pp0 <= p_tile_cap:
        Pt, Pp, n_ptiles = Pp0, Pp0, 1
    else:
        n_ptiles = -(-Pp0 // p_tile_cap)
        Pt = _round_up(-(-P // n_ptiles), 128)
        Pp = Pt * n_ptiles

    # Stage directly in the MXU dtype (halves prologue HBM traffic).  Padded
    # prediction points get a large negative logit so softplus/sigmoid are
    # exactly 0; padded targets are all zero.  Pad value is dtype-guarded so
    # an fp8 matmul dtype would not saturate.
    pad_val = -min(1.0e4, 0.5 * float(jnp.finfo(matmul_dtype).max))
    pred_p = jnp.full((B, Qp, Pp), pad_val, dtype=matmul_dtype)
    pred_p = pred_p.at[:, :Q, :P].set(pred_pts.astype(matmul_dtype))
    # Targets pre-transposed to (B, Pp, Tp): canonical NN matmuls (no XLU
    # transpose per grid step) and contiguous per-tile DMA slabs.
    tgt_p = jnp.zeros((B, Pp, Tp), dtype=matmul_dtype)
    tgt_p = tgt_p.at[:, :P, :T].set(
        jnp.swapaxes(tgt_pts, 1, 2).astype(matmul_dtype))

    # exact f32 per-target point sums (dice denominator) from unpadded data
    t_sum = jnp.zeros((B, 1, Tp), jnp.float32)
    t_sum = t_sum.at[:, 0, :T].set(jnp.sum(tgt_pts.astype(jnp.float32), -1))

    # classification cost hoisted out of the kernel: tiny exact f32 GEMM
    probs = jax.nn.softmax(class_logits.astype(jnp.float32), axis=-1)
    ccls = -jnp.einsum("bqc,btc->bqt", probs, class_onehot.astype(jnp.float32))
    ccls_p = jnp.zeros((B, Qp, Tp), jnp.float32)
    ccls_p = ccls_p.at[:, :Q, :T].set(ccls)

    vmem_limit = _vmem_limit_bytes(Qp, Tp, Pt, mm_bytes, dflt["vmem_cap"])

    kernel = functools.partial(
        _cost_kernel, w_class=float(cost_class), w_mask=float(cost_mask),
        w_dice=float(cost_dice), inv_points=1.0 / float(P),
        ew_dtype=jnp.dtype(elementwise_dtype))

    out = pl.pallas_call(
        kernel,
        out_shape=jax.ShapeDtypeStruct((B, Qp, Tp), jnp.float32),
        grid_spec=pltpu.PrefetchScalarGridSpec(
            num_scalar_prefetch=0,
            grid=(B, n_ptiles),
            in_specs=[
                pl.BlockSpec((pl.Squeezed(), Qp, Pt), lambda b, k: (b, 0, k)),
                pl.BlockSpec((pl.Squeezed(), Pt, Tp), lambda b, k: (b, k, 0)),
                pl.BlockSpec((pl.Squeezed(), Qp, Tp), lambda b, k: (b, 0, 0)),
                pl.BlockSpec((pl.Squeezed(), 1, Tp), lambda b, k: (b, 0, 0)),
            ],
            out_specs=pl.BlockSpec((pl.Squeezed(), Qp, Tp),
                                   lambda b, k: (b, 0, 0)),
            scratch_shapes=[
                pltpu.VMEM((Qp, Tp), jnp.float32),   # sum_p pred * tgt
                pltpu.VMEM((Qp, Tp), jnp.float32),   # sum_p sigmoid(pred)*tgt
                pltpu.VMEM((Qp, 1), jnp.float32),    # sum_p softplus(pred)
                pltpu.VMEM((Qp, 1), jnp.float32),    # sum_p sigmoid(pred)
            ]),
        compiler_params=pltpu.CompilerParams(
            # batch axis "parallel" -> dual-TensorCore sharding on v7x; the
            # P-tile axis is the accumulated ("arbitrary") one.
            # TODO(synk): if production B == 1 on v7x, split Q across the two
            # TensorCores (CORE_PARALLEL leading axis) instead.
            dimension_semantics=("parallel", "arbitrary"),
            vmem_limit_bytes=vmem_limit),
    )(pred_p, tgt_p, ccls_p, t_sum)

    return out[:, :Q, :T]


# --------------------------------------------------------------------------
# JAX glue: grid_sample-style point sampling (bilinear, align_corners=False,
# padding_mode='zeros'), equivalent to sample_point() on 2*coords - 1.
# --------------------------------------------------------------------------
def _sample_points(masks, coords):
    # masks: (N, H, W), coords: (P, 2) with (x, y) in [0, 1]
    N, H, W = masks.shape
    x = coords[:, 0] * W - 0.5
    y = coords[:, 1] * H - 0.5
    x0 = jnp.floor(x)
    y0 = jnp.floor(y)
    x1 = x0 + 1.0
    y1 = y0 + 1.0
    wx1 = x - x0
    wx0 = 1.0 - wx1
    wy1 = y - y0
    wy0 = 1.0 - wy1

    def gather(ix, iy):
        valid = ((ix >= 0) & (ix <= W - 1) &
                 (iy >= 0) & (iy <= H - 1)).astype(masks.dtype)
        ixc = jnp.clip(ix, 0, W - 1).astype(jnp.int32)
        iyc = jnp.clip(iy, 0, H - 1).astype(jnp.int32)
        return masks[:, iyc, ixc] * valid[None, :]

    return (gather(x0, y0) * (wx0 * wy0)[None, :]
            + gather(x1, y0) * (wx1 * wy0)[None, :]
            + gather(x0, y1) * (wx0 * wy1)[None, :]
            + gather(x1, y1) * (wx1 * wy1)[None, :])   # (N, P)


# --------------------------------------------------------------------------
# Host-side Hungarian assignment (Jonker-Volgenant shortest augmenting path,
# O(n^2 m)); matches scipy.optimize.linear_sum_assignment output convention.
# --------------------------------------------------------------------------
def _linear_sum_assignment(cost):
    cost = np.asarray(cost, dtype=np.float64)
    transposed = False
    if cost.shape[0] > cost.shape[1]:
        cost = cost.T
        transposed = True
    n, m = cost.shape                                     # n <= m
    u = np.zeros(n + 1)
    v = np.zeros(m + 1)
    p = np.zeros(m + 1, dtype=np.int64)                   # column -> row (1-based)
    way = np.zeros(m + 1, dtype=np.int64)
    for i in range(1, n + 1):
        p[0] = i
        j0 = 0
        minv = np.full(m + 1, np.inf)
        used = np.zeros(m + 1, dtype=bool)
        while True:
            used[j0] = True
            i0 = p[j0]
            free = ~used
            free[0] = False
            cur = np.concatenate(([np.inf], cost[i0 - 1, :] - u[i0] - v[1:]))
            upd = free & (cur < minv)
            minv[upd] = cur[upd]
            way[upd] = j0
            cand = np.where(free, minv, np.inf)
            j1 = int(np.argmin(cand))
            delta = cand[j1]
            u[p[used]] += delta
            v[used] -= delta
            minv[~used] -= delta
            j0 = j1
            if p[j0] == 0:
                break
        while j0 != 0:
            j1 = way[j0]
            p[j0] = p[j1]
            j0 = j1
    rows = p[1:] - 1
    cols = np.arange(m, dtype=np.int64)
    valid = rows >= 0
    rows, cols = rows[valid], cols[valid]
    order = np.argsort(rows)
    rows, cols = rows[order], cols[order]
    if transposed:
        rows, cols = cols, rows
        order = np.argsort(rows)
        rows, cols = rows[order], cols[order]
    return rows.astype(np.int64), cols.astype(np.int64)


# --------------------------------------------------------------------------
# Matcher wrapper (mirrors Mask2FormerHungarianMatcher.forward)
# --------------------------------------------------------------------------
class Mask2FormerHungarianMatcherPallas:
    def __init__(self, cost_class=1.0, cost_mask=1.0, cost_dice=1.0,
                 num_points=128):
        if cost_class == 0 and cost_mask == 0 and cost_dice == 0:
            raise ValueError("All costs cant be 0")
        self.num_points = num_points
        self.cost_class = cost_class
        self.cost_mask = cost_mask
        self.cost_dice = cost_dice

    def __call__(self, intermediate_mask_predictions, class_queries_logits,
                 mask_labels, class_labels, rng):
        # intermediate_mask_predictions: (B, Q, H, W) predicted mask logits
        # class_queries_logits:          (B, Q, C)    class logits
        # mask_labels:                   (B, T, H, W) binary target masks
        # class_labels:                  (B, T)       int target classes
        B = intermediate_mask_predictions.shape[0]
        C = class_queries_logits.shape[-1]
        P = self.num_points

        # same random points shared by pred/target within a batch element
        coords = jax.random.uniform(rng, (B, P, 2), dtype=jnp.float32)
        pred_pts = jax.vmap(_sample_points)(
            intermediate_mask_predictions.astype(jnp.float32), coords)
        tgt_pts = jax.vmap(_sample_points)(
            mask_labels.astype(jnp.float32), coords)
        onehot = jax.nn.one_hot(class_labels, C, dtype=jnp.float32)

        cost = compute_cost_matrices(
            pred_pts, tgt_pts, class_queries_logits.astype(jnp.float32),
            onehot, self.cost_class, self.cost_mask, self.cost_dice)
        cost = jax.block_until_ready(cost)

        # TODO(synk): Hungarian linear_sum_assignment is a sequential CPU
        # algorithm with no Pallas equivalent; solved host-side on the
        # kernel-produced cost matrices (exactly as the PyTorch code does
        # with cost_matrix.cpu()).  Assumes all batch elements share the same
        # unpadded number of targets T.
        indices = []
        cost_np = np.asarray(cost)
        for i in range(B):
            rows, cols = _linear_sum_assignment(cost_np[i])
            indices.append((rows, cols))
        return indices, cost


if __name__ == "__main__":
    key = jax.random.PRNGKey(0)
    k1, k2, k3, k4, k5, k6 = jax.random.split(key, 6)

    B, Q, C, T, H, W = 2, 8, 5, 3, 16, 16
    num_points = 128

    mask_preds = jax.random.normal(k1, (B, Q, H, W), dtype=jnp.float32)
    class_logits = jax.random.normal(k2, (B, Q, C), dtype=jnp.float32)
    mask_labels = (jax.random.uniform(k3, (B, T, H, W)) > 0.5).astype(jnp.float32)
    class_labels = jax.random.randint(k4, (B, T), 0, C)

    matcher = Mask2FormerHungarianMatcherPallas(num_points=num_points)
    indices, cost = matcher(mask_preds, class_logits, mask_labels,
                            class_labels, k5)
    jax.block_until_ready(cost)

    # ---- pure-JAX f32 reference check of the kernel-computed cost matrices ----
    coords = jax.random.uniform(k5, (B, num_points, 2), dtype=jnp.float32)
    pred_pts = jax.vmap(_sample_points)(mask_preds, coords)
    tgt_pts = jax.vmap(_sample_points)(mask_labels, coords)
    probs = jax.nn.softmax(class_logits, axis=-1)
    ref = []
    for i in range(B):
        cc = -probs[i][:, class_labels[i]]
        p, t = pred_pts[i], tgt_pts[i]
        cm = (jax.nn.softplus(-p) @ t.T
              + jax.nn.softplus(p) @ (1.0 - t).T) / num_points
        s = jax.nn.sigmoid(p)
        cd = 1.0 - (2.0 * (s @ t.T) + 1.0) / (
            s.sum(-1)[:, None] + t.sum(-1)[None, :] + 1.0)
        ref.append(jnp.clip(cm + cc + cd, -1e10, 1e10))
    ref = jnp.stack(ref)
    # bf16 MXU operands (+ bf16 elementwise on v6e/v7x) + approx sigmoid recip
    err = float(np.abs(np.asarray(cost) - np.asarray(ref)).max())
    assert np.allclose(np.asarray(cost), np.asarray(ref),
                       atol=3e-2, rtol=3e-2), f"max abs err {err}"

    # ---- exercise the multi-P-tile accumulation path explicitly ----
    P2 = 384
    pp = jax.random.normal(k6, (1, Q, P2), dtype=jnp.float32)
    tt = (jax.random.uniform(jax.random.fold_in(k6, 1), (1, T, P2)) > 0.5
          ).astype(jnp.float32)
    onehot2 = jax.nn.one_hot(class_labels[:1], C, dtype=jnp.float32)
    cost2 = compute_cost_matrices(pp, tt, class_logits[:1], onehot2,
                                  p_tile=128)
    cc2 = -jnp.einsum("bqc,btc->bqt", jax.nn.softmax(class_logits[:1], -1),
                      onehot2)
    cm2 = (jnp.einsum("bqp,btp->bqt", jax.nn.softplus(-pp), tt)
           + jnp.einsum("bqp,btp->bqt", jax.nn.softplus(pp), 1.0 - tt)) / P2
    s2 = jax.nn.sigmoid(pp)
    cd2 = 1.0 - (2.0 * jnp.einsum("bqp,btp->bqt", s2, tt) + 1.0) / (
        s2.sum(-1)[:, :, None] + tt.sum(-1)[:, None, :] + 1.0)
    ref2 = jnp.clip(cc2 + cm2 + cd2, -1e10, 1e10)
    err2 = float(np.abs(np.asarray(cost2) - np.asarray(ref2)).max())
    assert np.allclose(np.asarray(cost2), np.asarray(ref2),
                       atol=3e-2, rtol=3e-2), f"max abs err (tiled) {err2}"

    # ---- assignment sanity: optimal vs brute force on the small problem ----
    cost_np = np.asarray(cost)
    for i in range(B):
        rows, cols = indices[i]
        assert len(rows) == min(Q, T) and len(cols) == min(Q, T)
        got = cost_np[i][rows, cols].sum()
        best = min(sum(cost_np[i][perm[j], j] for j in range(T))
                   for perm in permutations(range(Q), T))
        assert got <= best + 1e-6, (got, best)

    print("KERNEL_OK")
</pallas_src>

<mosaic_0001>
module attributes {stable_mosaic.version = 11 : i64} {
  func.func @_cost_kernel(%arg0: i32, %arg1: i32, %arg2: memref<1x16x128xbf16, #tpu.memory_space<vmem>>, %arg3: memref<1x128x128xbf16, #tpu.memory_space<vmem>>, %arg4: memref<1x16x128xf32, #tpu.memory_space<vmem>>, %arg5: memref<1x1x128xf32, #tpu.memory_space<vmem>>, %arg6: memref<1x16x128xf32, #tpu.memory_space<vmem>>, %arg7: memref<16x128xf32, #tpu.memory_space<vmem>>, %arg8: memref<16x128xf32, #tpu.memory_space<vmem>>, %arg9: memref<16x1xf32, #tpu.memory_space<vmem>>, %arg10: memref<16x1xf32, #tpu.memory_space<vmem>>) attributes {dimension_semantics = [#tpu.dimension_semantics<parallel>, #tpu.dimension_semantics<arbitrary>], iteration_bounds = array<i64: 2, 1>, scalar_prefetch = 0 : i64, scratch_operands = 4 : i64, tpu.core_type = #tpu.core_type<tc>, window_params = [{transform_indices = @transform_0, window_bounds = array<i64: 1, 16, 128>}, {transform_indices = @transform_1, window_bounds = array<i64: 1, 128, 128>}, {transform_indices = @transform_2, window_bounds = array<i64: 1, 16, 128>}, {transform_indices = @transform_3, window_bounds = array<i64: 1, 1, 128>}, {transform_indices = @transform_4, window_bounds = array<i64: 1, 16, 128>}]} {
    %c0_i32 = arith.constant 0 : i32
    %0 = arith.cmpi eq, %arg1, %c0_i32 : i32
    %1 = arith.extui %0 : i1 to i32
    %c0_i32_0 = arith.constant 0 : i32
    %2 = arith.cmpi ne, %1, %c0_i32_0 : i32
    scf.if %2 {
      %cst_32 = arith.constant 0.000000e+00 : f32
      %46 = vector.broadcast %cst_32 : f32 to vector<16x128xf32>
      %c0_33 = arith.constant 0 : index
      %c0_34 = arith.constant 0 : index
      %47 = vector.load %arg7[%c0_33, %c0_34] : memref<16x128xf32, #tpu.memory_space<vmem>>, vector<16x128xf32>
      tpu.vector_store %arg7[%c0_33, %c0_34], %46 {strides = array<i32>} : memref<16x128xf32, #tpu.memory_space<vmem>>, vector<16x128xf32>,
      %cst_35 = arith.constant 0.000000e+00 : f32
      %48 = vector.broadcast %cst_35 : f32 to vector<16x128xf32>
      %c0_36 = arith.constant 0 : index
      %c0_37 = arith.constant 0 : index
      %49 = vector.load %arg8[%c0_36, %c0_37] : memref<16x128xf32, #tpu.memory_space<vmem>>, vector<16x128xf32>
      tpu.vector_store %arg8[%c0_36, %c0_37], %48 {strides = array<i32>} : memref<16x128xf32, #tpu.memory_space<vmem>>, vector<16x128xf32>,
      %cst_38 = arith.constant 0.000000e+00 : f32
      %50 = vector.broadcast %cst_38 : f32 to vector<16x1xf32>
      %c0_39 = arith.constant 0 : index
      %c0_40 = arith.constant 0 : index
      %51 = vector.load %arg9[%c0_39, %c0_40] : memref<16x1xf32, #tpu.memory_space<vmem>>, vector<16x1xf32>
      tpu.vector_store %arg9[%c0_39, %c0_40], %50 {strides = array<i32>} : memref<16x1xf32, #tpu.memory_space<vmem>>, vector<16x1xf32>,
      %cst_41 = arith.constant 0.000000e+00 : f32
      %52 = vector.broadcast %cst_41 : f32 to vector<16x1xf32>
      %c0_42 = arith.constant 0 : index
      %c0_43 = arith.constant 0 : index
      %53 = vector.load %arg10[%c0_42, %c0_43] : memref<16x1xf32, #tpu.memory_space<vmem>>, vector<16x1xf32>
      tpu.vector_store %arg10[%c0_42, %c0_43], %52 {strides = array<i32>} : memref<16x1xf32, #tpu.memory_space<vmem>>, vector<16x1xf32>,
    } else {
    }
    %c0 = arith.constant 0 : index
    %c0_1 = arith.constant 0 : index
    %c0_2 = arith.constant 0 : index
    %3 = vector.load %arg2[%c0, %c0_1, %c0_2] : memref<1x16x128xbf16, #tpu.memory_space<vmem>>, vector<1x16x128xbf16>
    %4 = vector.shape_cast %3 : vector<1x16x128xbf16> to vector<16x128xbf16>
    %c0_3 = arith.constant 0 : index
    %c0_4 = arith.constant 0 : index
    %c0_5 = arith.constant 0 : index
    %5 = vector.load %arg3[%c0_3, %c0_4, %c0_5] : memref<1x128x128xbf16, #tpu.memory_space<vmem>>, vector<1x128x128xbf16>
    %6 = vector.shape_cast %5 : vector<1x128x128xbf16> to vector<128x128xbf16>
    %7 = arith.extf %4 : vector<16x128xbf16> to vector<16x128xf32>
    %8 = math.absf %7 : vector<16x128xf32>
    %cst = arith.constant 0.000000e+00 : f32
    %9 = vector.broadcast %cst : f32 to vector<16x128xf32>
    %10 = arith.subf %9, %8 : vector<16x128xf32>
    %11 = math.exp %10 : vector<16x128xf32>
    %cst_6 = arith.constant 0.000000e+00 : f32
    %12 = vector.broadcast %cst_6 : f32 to vector<16x128xf32>
    %13 = arith.maximumf %7, %12 : vector<16x128xf32>
    %14 = math.log1p %11 : vector<16x128xf32>
    %15 = arith.addf %13, %14 : vector<16x128xf32>
    %cst_7 = arith.constant 1.000000e+00 : f32
    %16 = vector.broadcast %cst_7 : f32 to vector<16x128xf32>
    %17 = arith.addf %16, %11 : vector<16x128xf32>
    %18 = tpu.reciprocal %17 {approx = true} : vector<16x128xf32> -> vector<16x128xf32>
    %cst_8 = arith.constant 0.000000e+00 : f32
    %19 = vector.broadcast %cst_8 : f32 to vector<16x128xf32>
    %20 = arith.cmpf oge, %7, %19 : vector<16x128xf32>
    %cst_9 = arith.constant 1.000000e+00 : f32
    %21 = vector.broadcast %cst_9 : f32 to vector<16x128xf32>
    %22 = arith.subf %21, %18 : vector<16x128xf32>
    %23 = arith.select %20, %18, %22 : vector<16x128xi1>, vector<16x128xf32>
    %c0_10 = arith.constant 0 : index
    %c0_11 = arith.constant 0 : index
    %24 = vector.load %arg7[%c0_10, %c0_11] : memref<16x128xf32, #tpu.memory_space<vmem>>, vector<16x128xf32>
    %cst_12 = arith.constant dense<0.000000e+00> : vector<16x128xf32>
    %25 = tpu.matmul %4, %6, %cst_12 {dimension_numbers = #tpu.dot_dimension_numbers<[1], [0], [0], [1], [0, 0, 1, 1], [], []>} : vector<16x128xbf16>, vector<128x128xbf16>, vector<16x128xf32> -> vector<16x128xf32>
    %26 = arith.addf %24, %25 : vector<16x128xf32>
    %c0_13 = arith.constant 0 : index
    %c0_14 = arith.constant 0 : index
    %27 = vector.load %arg7[%c0_13, %c0_14] : memref<16x128xf32, #tpu.memory_space<vmem>>, vector<16x128xf32>
    tpu.vector_store %arg7[%c0_13, %c0_14], %26 {strides = array<i32>} : memref<16x128xf32, #tpu.memory_space<vmem>>, vector<16x128xf32>,
    %c0_15 = arith.constant 0 : index
    %c0_16 = arith.constant 0 : index
    %28 = vector.load %arg8[%c0_15, %c0_16] : memref<16x128xf32, #tpu.memory_space<vmem>>, vector<16x128xf32>
    %29 = arith.truncf %23 : vector<16x128xf32> to vector<16x128xbf16>
    %cst_17 = arith.constant dense<0.000000e+00> : vector<16x128xf32>
    %30 = tpu.matmul %29, %6, %cst_17 {dimension_numbers = #tpu.dot_dimension_numbers<[1], [0], [0], [1], [0, 0, 1, 1], [], []>} : vector<16x128xbf16>, vector<128x128xbf16>, vector<16x128xf32> -> vector<16x128xf32>
    %31 = arith.addf %28, %30 : vector<16x128xf32>
    %c0_18 = arith.constant 0 : index
    %c0_19 = arith.constant 0 : index
    %32 = vector.load %arg8[%c0_18, %c0_19] : memref<16x128xf32, #tpu.memory_space<vmem>>, vector<16x128xf32>
    tpu.vector_store %arg8[%c0_18, %c0_19], %31 {strides = array<i32>} : memref<16x128xf32, #tpu.memory_space<vmem>>, vector<16x128xf32>,
    %c0_20 = arith.constant 0 : index
    %c0_21 = arith.constant 0 : index
    %33 = vector.load %arg9[%c0_20, %c0_21] : memref<16x1xf32, #tpu.memory_space<vmem>>, vector<16x1xf32>
    %cst_22 = arith.constant dense<0.000000e+00> : vector<16xf32>
    %34 = vector.multi_reduction <add>, %15, %cst_22 [1] : vector<16x128xf32> to vector<16xf32>
    %35 = vector.shape_cast %34 : vector<16xf32> to vector<16x1xf32>
    %36 = arith.addf %33, %35 : vector<16x1xf32>
    %c0_23 = arith.constant 0 : index
    %c0_24 = arith.constant 0 : index
    %37 = vector.load %arg9[%c0_23, %c0_24] : memref<16x1xf32, #tpu.memory_space<vmem>>, vector<16x1xf32>
    tpu.vector_store %arg9[%c0_23, %c0_24], %36 {strides = array<i32>} : memref<16x1xf32, #tpu.memory_space<vmem>>, vector<16x1xf32>,
    %c0_25 = arith.constant 0 : index
    %c0_26 = arith.constant 0 : index
    %38 = vector.load %arg10[%c0_25, %c0_26] : memref<16x1xf32, #tpu.memory_space<vmem>>, vector<16x1xf32>
    %cst_27 = arith.constant dense<0.000000e+00> : vector<16xf32>
    %39 = vector.multi_reduction <add>, %23, %cst_27 [1] : vector<16x128xf32> to vector<16xf32>
    %40 = vector.shape_cast %39 : vector<16xf32> to vector<16x1xf32>
    %41 = arith.addf %38, %40 : vector<16x1xf32>
    %c0_28 = arith.constant 0 : index
    %c0_29 = arith.constant 0 : index
    %42 = vector.load %arg10[%c0_28, %c0_29] : memref<16x1xf32, #tpu.memory_space<vmem>>, vector<16x1xf32>
    tpu.vector_store %arg10[%c0_28, %c0_29], %41 {strides = array<i32>} : memref<16x1xf32, #tpu.memory_space<vmem>>, vector<16x1xf32>,
    %c0_i32_30 = arith.constant 0 : i32
    %43 = arith.cmpi eq, %arg1, %c0_i32_30 : i32
    %44 = arith.extui %43 : i1 to i32
    %c0_i32_31 = arith.constant 0 : i32
    %45 = arith.cmpi ne, %44, %c0_i32_31 : i32
    scf.if %45 {
      %c0_32 = arith.constant 0 : index
      %c0_33 = arith.constant 0 : index
      %46 = vector.load %arg9[%c0_32, %c0_33] : memref<16x1xf32, #tpu.memory_space<vmem>>, vector<16x1xf32>
      %c0_34 = arith.constant 0 : index
      %c0_35 = arith.constant 0 : index
      %47 = vector.load %arg7[%c0_34, %c0_35] : memref<16x128xf32, #tpu.memory_space<vmem>>, vector<16x128xf32>
      %48 = vector.broadcast %46 : vector<16x1xf32> to vector<16x128xf32>
      %49 = arith.subf %48, %47 : vector<16x128xf32>
      %cst_36 = arith.constant 7.812500e-03 : f32
      %50 = vector.broadcast %cst_36 : f32 to vector<16x128xf32>
      %51 = arith.mulf %49, %50 : vector<16x128xf32>
      %c0_37 = arith.constant 0 : index
      %c0_38 = arith.constant 0 : index
      %52 = vector.load %arg10[%c0_37, %c0_38] : memref<16x1xf32, #tpu.memory_space<vmem>>, vector<16x1xf32>
      %c0_39 = arith.constant 0 : index
      %c0_40 = arith.constant 0 : index
      %c0_41 = arith.constant 0 : index
      %53 = vector.load %arg5[%c0_39, %c0_40, %c0_41] : memref<1x1x128xf32, #tpu.memory_space<vmem>>, vector<1x1x128xf32>
      %54 = vector.shape_cast %53 : vector<1x1x128xf32> to vector<1x128xf32>
      %55 = vector.broadcast %52 : vector<16x1xf32> to vector<16x128xf32>
      %56 = vector.broadcast %54 : vector<1x128xf32> to vector<16x128xf32>
      %57 = arith.addf %55, %56 : vector<16x128xf32>
      %cst_42 = arith.constant 1.000000e+00 : f32
      %58 = vector.broadcast %cst_42 : f32 to vector<16x128xf32>
      %59 = arith.addf %57, %58 : vector<16x128xf32>
      %c0_43 = arith.constant 0 : index
      %c0_44 = arith.constant 0 : index
      %60 = vector.load %arg8[%c0_43, %c0_44] : memref<16x128xf32, #tpu.memory_space<vmem>>, vector<16x128xf32>
      %cst_45 = arith.constant 2.000000e+00 : f32
      %61 = vector.broadcast %cst_45 : f32 to vector<16x128xf32>
      %62 = arith.mulf %61, %60 : vector<16x128xf32>
      %cst_46 = arith.constant 1.000000e+00 : f32
      %63 = vector.broadcast %cst_46 : f32 to vector<16x128xf32>
      %64 = arith.addf %62, %63 : vector<16x128xf32>
      %65 = arith.divf %64, %59 : vector<16x128xf32>
      %cst_47 = arith.constant 1.000000e+00 : f32
      %66 = vector.broadcast %cst_47 : f32 to vector<16x128xf32>
      %67 = arith.subf %66, %65 : vector<16x128xf32>
      %cst_48 = arith.constant 1.000000e+00 : f32
      %68 = vector.broadcast %cst_48 : f32 to vector<16x128xf32>
      %69 = arith.mulf %68, %51 : vector<16x128xf32>
      %c0_49 = arith.constant 0 : index
      %c0_50 = arith.constant 0 : index
      %c0_51 = arith.constant 0 : index
      %70 = vector.load %arg4[%c0_49, %c0_50, %c0_51] : memref<1x16x128xf32, #tpu.memory_space<vmem>>, vector<1x16x128xf32>
      %71 = vector.shape_cast %70 : vector<1x16x128xf32> to vector<16x128xf32>
      %cst_52 = arith.constant 1.000000e+00 : f32
      %72 = vector.broadcast %cst_52 : f32 to vector<16x128xf32>
      %73 = arith.mulf %72, %71 : vector<16x128xf32>
      %74 = arith.addf %69, %73 : vector<16x128xf32>
      %cst_53 = arith.constant 1.000000e+00 : f32
      %75 = vector.broadcast %cst_53 : f32 to vector<16x128xf32>
      %76 = arith.mulf %75, %67 : vector<16x128xf32>
      %77 = arith.addf %74, %76 : vector<16x128xf32>
      %cst_54 = arith.constant -1.000000e+10 : f32
      %cst_55 = arith.constant 1.000000e+10 : f32
      %78 = vector.broadcast %cst_54 : f32 to vector<16x128xf32>
      %79 = arith.maximumf %78, %77 : vector<16x128xf32>
      %80 = vector.broadcast %cst_55 : f32 to vector<16x128xf32>
      %81 = arith.minimumf %80, %79 : vector<16x128xf32>
      %c0_56 = arith.constant 0 : index
      %c0_57 = arith.constant 0 : index
      %c0_58 = arith.constant 0 : index
      %82 = vector.load %arg6[%c0_56, %c0_57, %c0_58] : memref<1x16x128xf32, #tpu.memory_space<vmem>>, vector<1x16x128xf32>
      %83 = vector.shape_cast %82 : vector<1x16x128xf32> to vector<16x128xf32>
      %84 = vector.shape_cast %81 : vector<16x128xf32> to vector<1x16x128xf32>
      tpu.vector_store %arg6[%c0_56, %c0_57, %c0_58], %84 {strides = array<i32>} : memref<1x16x128xf32, #tpu.memory_space<vmem>>, vector<1x16x128xf32>,
    } else {
    }
    return
  }
  func.func @transform_0(%arg0: i32, %arg1: i32) -> (i32, i32, i32) {
    %c0_i32 = arith.constant 0 : i32
    %c0_i32_0 = arith.constant 0 : i32
    return %arg0, %c0_i32, %arg1 : i32, i32, i32
  }
  func.func @transform_1(%arg0: i32, %arg1: i32) -> (i32, i32, i32) {
    %c0_i32 = arith.constant 0 : i32
    %c0_i32_0 = arith.constant 0 : i32
    return %arg0, %arg1, %c0_i32 : i32, i32, i32
  }
  func.func @transform_2(%arg0: i32, %arg1: i32) -> (i32, i32, i32) {
    %c0_i32 = arith.constant 0 : i32
    %c0_i32_0 = arith.constant 0 : i32
    %c0_i32_1 = arith.constant 0 : i32
    return %arg0, %c0_i32, %c0_i32_0 : i32, i32, i32
  }
  func.func @transform_3(%arg0: i32, %arg1: i32) -> (i32, i32, i32) {
    %c0_i32 = arith.constant 0 : i32
    %c0_i32_0 = arith.constant 0 : i32
    %c0_i32_1 = arith.constant 0 : i32
    return %arg0, %c0_i32, %c0_i32_0 : i32, i32, i32
  }
  func.func @transform_4(%arg0: i32, %arg1: i32) -> (i32, i32, i32) {
    %c0_i32 = arith.constant 0 : i32
    %c0_i32_0 = arith.constant 0 : i32
    %c0_i32_1 = arith.constant 0 : i32
    return %arg0, %c0_i32, %c0_i32_0 : i32, i32, i32
  }
}

</mosaic_0001>

<llo_original>
// kernel: tpu_custom_call.1
$region0: #{tpu_custom_call.1}
  #allocation0 [shape = 'u32[]', space=smem, size = 0x4, offset = 0x4, fixed_abs, tag = 'smem constant byte address 0x4 - core index']
  #allocation1 [shape = 'u32[144,128]{1,0:T(1,128)}', space=vmem, size = 0x12000, scoped, tag = 'internal scratch']
  #allocation2 [shape = 'f32[16,128]{1,0:T(8,128)}', space=vmem, size = 0x2000, scoped, tag = 'scratch operand']
  #allocation3 [shape = 'f32[16,128]{1,0:T(8,128)}', space=vmem, size = 0x2000, scoped, tag = 'scratch operand']
  #allocation4 [shape = 'f32[16,1]{1,0:T(8,128)}', space=vmem, size = 0x2000, scoped, tag = 'scratch operand']
  #allocation5 [shape = 'f32[16,1]{1,0:T(8,128)}', space=vmem, size = 0x2000, scoped, tag = 'scratch operand']
  %s0 = inlined_call_operand.hbm [shape: bf16[2,16,128], index: 0, kind: input, shape index: {}]
  %s1 = inlined_call_operand.hbm [shape: bf16[2,128,128], index: 1, kind: input, shape index: {}]
  %s2 = inlined_call_operand.hbm [shape: f32[2,16,128], index: 2, kind: input, shape index: {}]
  %s3 = inlined_call_operand.vmem [shape: f32[2,1,128], index: 3, kind: input, shape index: {}]
  %s4 = inlined_call_operand.hbm [shape: f32[2,16,128], index: 4, kind: output, shape index: {}]
  %s5 = sld [smem:[#allocation0]]
  $region69: #{tpu_custom_call.1} parent=0
    _
  %s7 = ssub.s32 1, %s5
  %s8 = scalar_select 0, %s7, %s5
  $region1: #{tpu_custom_call.1} parent=0
    #allocation6 [shape = 'u8[8192]{0}', space=vmem, size = 0x2000, scoped, tag = 'input window, operand 0']
    #allocation7 [shape = 's32[2]{0}', space=sflag, size = 0x8, scoped, tag = 'scoped memory for tpu_custom_call.1']
    #allocation8 [shape = 's32[2]{0}', space=sflag, size = 0x8, scoped, tag = 'scoped memory for tpu_custom_call.1']
    #allocation9 [shape = 'u8[65536]{0}', space=vmem, size = 0x10000, scoped, tag = 'input window, operand 1']
    #allocation10 [shape = 's32[2]{0}', space=sflag, size = 0x8, scoped, tag = 'scoped memory for tpu_custom_call.1']
    #allocation11 [shape = 'u8[16384]{0}', space=vmem, size = 0x4000, scoped, tag = 'input window, operand 2']
    #allocation12 [shape = 'u8[16384]{0}', space=vmem, size = 0x4000, scoped, tag = 'output window, operand 0']
    %9 = vsyncpa [#allocation7], 0
    %s10 = scalar_lea.sflag [#allocation7], 1
    %11 = vsyncpa %s10, 0
    %12 = vsyncpa [#allocation10], 0
    %s13 = scalar_lea.sflag [#allocation10], 1
    %14 = vsyncpa %s13, 0
    %15 = vsyncpa [#allocation8], 0
    %s16 = scalar_lea.sflag [#allocation8], 1
    %17 = vsyncpa %s16, 0
    loop: start=0, step=1, limit=4
    $region2: #{tpu_custom_call.1} parent=1 // loop_pre_header
      _
    $region3: #{tpu_custom_call.1} parent=1 // loop_header
      %s19 = sphi 0, %s23
      %p20 = scmp.ge.s32.totalorder %s19, 4
      %s26 = sphi 0, %s38
      %s27 = sphi 0, %s34
      %s28 = sphi 0, %s26
      %s29 = sphi 0, %s27
      %s30 = sphi 0, %s28
      %s31 = sphi 0, %s29
      %s43 = sphi 0, %s45
      %s46 = sphi 0, %s43
      %s47 = sphi 0, %s46
      %s63 = sphi 0, %s47
      %s71 = sphi 0, %s73
      %s74 = sphi 0, %s71
      %s75 = sphi 0, %s74
      %s91 = sphi 0, %s75
      %s97 = sphi 0, %s99
      %s100 = sphi 0, %s97
      %s101 = sphi 0, %s100
      %s117 = sphi 0, %s101
      %s123 = sphi 0, %s125
      %s126 = sphi 0, %s123
      %s127 = sphi 0, %s126
      %s143 = sphi 0, %s127
      %s149 = sphi 0, %s151
      %s152 = sphi 0, %s149
      %s153 = sphi 0, %s152
      %s169 = sphi 0, %s153
    $region4: #{tpu_custom_call.1} parent=1 // loop_header_branch
      %22 = sbr.rel (%p20) target = $region8
    $region5: #{tpu_custom_call.1} parent=1 // loop_body
      %s24 = ssub.s32 %s19, 1
      %s25 = ssub.s32 %s19, 2
      %s32 = sadd.s32 1, %s27
      %p33 = scmp.ge.s32.totalorder %s32, 1
      %s34 = scalar_select %p33, 0, %s32
      %s35 = sadd.s32 1, %s26
      %s36 = scalar_select %p33, %s35, %s26
      %p37 = scmp.ge.s32.totalorder %s36, 2
      %s38 = scalar_select %p37, 0, %s36
      %s39 = ssub.s32 %s26, %s38
      %s40 = ssub.s32 %s27, %s34
      %s41 = sor.u32 %s39, %s40
      %p42 = scmp.eq.s32.totalorder %s41, 0
      %s44 = sadd.s32 %s43, 1
      %s45 = scalar_select %p42, %s43, %s44
      %p48 = pneg %p42
      %p49 = scmp.eq.s32.totalorder %s19, 1
      %p50 = por %p48, %p49
      %p51 = scmp.ne.s32.totalorder %s43, %s46
      %p52 = scmp.eq.s32.totalorder %s19, 0
      %p53 = por %p51, %p52
      %p54 = scmp.ne.s32.totalorder %s43, %s46
      %p55 = scmp.eq.s32.totalorder %s24, 1
      %p56 = por %p54, %p55
      %p57 = scmp.ne.s32.totalorder %s46, %s47
      %p58 = scmp.eq.s32.totalorder %s24, 0
      %p59 = por %p57, %p58
      %p60 = scmp.ne.s32.totalorder %s46, %s47
      %p61 = scmp.eq.s32.totalorder %s25, 1
      %p62 = por %p60, %p61
      %p64 = scmp.ne.s32.totalorder %s47, %s63
      %p65 = scmp.eq.s32.totalorder %s25, 0
      %p66 = por %p64, %p65
      %s67 = ssub.s32 %s26, %s38
      %s68 = ssub.s32 %s27, %s34
      %s69 = sor.u32 %s67, %s68
      %p70 = scmp.eq.s32.totalorder %s69, 0
      %s72 = sadd.s32 %s71, 1
      %s73 = scalar_select %p70, %s71, %s72
      %p76 = pneg %p70
      %p77 = scmp.eq.s32.totalorder %s19, 1
      %p78 = por %p76, %p77
      %p79 = scmp.ne.s32.totalorder %s71, %s74
      %p80 = scmp.eq.s32.totalorder %s19, 0
      %p81 = por %p79, %p80
      %p82 = scmp.ne.s32.totalorder %s71, %s74
      %p83 = scmp.eq.s32.totalorder %s24, 1
      %p84 = por %p82, %p83
      %p85 = scmp.ne.s32.totalorder %s74, %s75
      %p86 = scmp.eq.s32.totalorder %s24, 0
      %p87 = por %p85, %p86
      %p88 = scmp.ne.s32.totalorder %s74, %s75
      %p89 = scmp.eq.s32.totalorder %s25, 1
      %p90 = por %p88, %p89
      %p92 = scmp.ne.s32.totalorder %s75, %s91
      %p93 = scmp.eq.s32.totalorder %s25, 0
      %p94 = por %p92, %p93
      %s95 = ssub.s32 %s26, %s38
      %p96 = scmp.eq.s32.totalorder %s95, 0
      %s98 = sadd.s32 %s97, 1
      %s99 = scalar_select %p96, %s97, %s98
      %p102 = pneg %p96
      %p103 = scmp.eq.s32.totalorder %s19, 1
      %p104 = por %p102, %p103
      %p105 = scmp.ne.s32.totalorder %s97, %s100
      %p106 = scmp.eq.s32.totalorder %s19, 0
      %p107 = por %p105, %p106
      %p108 = scmp.ne.s32.totalorder %s97, %s100
      %p109 = scmp.eq.s32.totalorder %s24, 1
      %p110 = por %p108, %p109
      %p111 = scmp.ne.s32.totalorder %s100, %s101
      %p112 = scmp.eq.s32.totalorder %s24, 0
      %p113 = por %p111, %p112
      %p114 = scmp.ne.s32.totalorder %s100, %s101
      %p115 = scmp.eq.s32.totalorder %s25, 1
      %p116 = por %p114, %p115
      %p118 = scmp.ne.s32.totalorder %s101, %s117
      %p119 = scmp.eq.s32.totalorder %s25, 0
      %p120 = por %p118, %p119
      %s121 = ssub.s32 %s26, %s38
      %p122 = scmp.eq.s32.totalorder %s121, 0
      %s124 = sadd.s32 %s123, 1
      %s125 = scalar_select %p122, %s123, %s124
      %p128 = pneg %p122
      %p129 = scmp.eq.s32.totalorder %s19, 1
      %p130 = por %p128, %p129
      %p131 = scmp.ne.s32.totalorder %s123, %s126
      %p132 = scmp.eq.s32.totalorder %s19, 0
      %p133 = por %p131, %p132
      %p134 = scmp.ne.s32.totalorder %s123, %s126
      %p135 = scmp.eq.s32.totalorder %s24, 1
      %p136 = por %p134, %p135
      %p137 = scmp.ne.s32.totalorder %s126, %s127
      %p138 = scmp.eq.s32.totalorder %s24, 0
      %p139 = por %p137, %p138
      %p140 = scmp.ne.s32.totalorder %s126, %s127
      %p141 = scmp.eq.s32.totalorder %s25, 1
      %p142 = por %p140, %p141
      %p144 = scmp.ne.s32.totalorder %s127, %s143
      %p145 = scmp.eq.s32.totalorder %s25, 0
      %p146 = por %p144, %p145
      %s147 = ssub.s32 %s26, %s38
      %p148 = scmp.eq.s32.totalorder %s147, 0
      %s150 = sadd.s32 %s149, 1
      %s151 = scalar_select %p148, %s149, %s150
      %p154 = pneg %p148
      %p155 = scmp.eq.s32.totalorder %s19, 1
      %p156 = por %p154, %p155
      %p157 = scmp.ne.s32.totalorder %s149, %s152
      %p158 = scmp.eq.s32.totalorder %s19, 0
      %p159 = por %p157, %p158
      %p160 = scmp.ne.s32.totalorder %s149, %s152
      %p161 = scmp.eq.s32.totalorder %s24, 1
      %p162 = por %p160, %p161
      %p163 = scmp.ne.s32.totalorder %s152, %s153
      %p164 = scmp.eq.s32.totalorder %s24, 0
      %p165 = por %p163, %p164
      %p166 = scmp.ne.s32.totalorder %s152, %s153
      %p167 = scmp.eq.s32.totalorder %s25, 1
      %p168 = por %p166, %p167
      %p170 = scmp.ne.s32.totalorder %s153, %s169
      %p171 = scmp.eq.s32.totalorder %s25, 0
      %p172 = por %p170, %p171
      %p173 = scmp.le.s32.totalorder 1, %s19
      %p174 = scmp.lt.s32.totalorder %s19, 3
      %p175 = pnand %p173, %p174
      %p176 = pneg %p175
      // Predicated region
      $region9: #{tpu_custom_call.1} parent=5 // pred_check
        _
      $region10: #{tpu_custom_call.1} parent=5 // pred_check_branch
        %178 = sbr.rel (%p175) target = $region12
      $region11: #{tpu_custom_call.1} parent=5 // pred_region
        %s179 = ssub.s32 %s19, 1
      $region12: #{tpu_custom_call.1} parent=5 // pred_fallthru
        _
      %p180 = scmp.lt.s32.totalorder %s19, 2
      // Predicated region
      $region13: #{tpu_custom_call.1} parent=5 // pred_check
        %p181 = pneg %p180
      $region14: #{tpu_custom_call.1} parent=5 // pred_check_branch
        %183 = sbr.rel (%p181) target = $region16
      $region15: #{tpu_custom_call.1} parent=5 // pred_region
        // Predicated region
        $region17: #{tpu_custom_call.1} parent=15 // pred_check
          %p184 = pneg %p53
        $region18: #{tpu_custom_call.1} parent=15 // pred_check_branch
          %186 = sbr.rel (%p184) target = $region20
        $region19: #{tpu_custom_call.1} parent=15 // pred_region
          %s187 = sand.u32 %s43, 1
          %s188 = scalar_lea.sflag [#allocation7], %s187
          %s189 = sand.u32 %s43, 1
          %s190 = smul.addr %s189, 8
          %s191 = scalar_lea.vmem [#allocation6], %s190
          %s193 = ssub.s32 128, 128
          %194 = vsyncadd %s188, %s193
          %s195 = smul.addr %s26, 2
          %s196 = sadd.s32 %s27, %s195
          %s197 = smul.addr %s196, 64
          %s198 = scalar_lea.hbm %s0, %s197
          %s199 = sshll.u32 %s191, 4
          %s200 = int_to_ptr.vmem [resolvable:$true] %s199
          %205 = dma.hbm_to_vmem [thread:$0]  %s198, 128, %s200, %s188, 64, 64, 4
        $region20: #{tpu_custom_call.1} parent=15 // pred_fallthru
          _
        // Predicated region
        $region21: #{tpu_custom_call.1} parent=15 // pred_check
          %p206 = pneg %p81
        $region22: #{tpu_custom_call.1} parent=15 // pred_check_branch
          %208 = sbr.rel (%p206) target = $region24
        $region23: #{tpu_custom_call.1} parent=15 // pred_region
          %s209 = sand.u32 %s19, 1
          %s210 = scalar_lea.sflag [#allocation10], %s209
          %s211 = sand.u32 %s71, 1
          %s212 = smul.addr %s211, 64
          %s213 = scalar_lea.vmem [#allocation9], %s212
          %s214 = smul.u32 16, %s27
          %s216 = ssub.s32 1024, 1024
          %217 = vsyncadd %s210, %s216
          %s218 = smul.addr %s26, 16
          %s219 = sadd.s32 %s214, %s218
          %s220 = smul.addr %s219, 64
          %s221 = scalar_lea.hbm %s1, %s220
          %s222 = sshll.u32 %s213, 4
          %s223 = int_to_ptr.vmem [resolvable:$true] %s222
          %228 = dma.hbm_to_vmem [thread:$0]  %s221, 1024, %s223, %s210, 64, 64, 4
        $region24: #{tpu_custom_call.1} parent=15 // pred_fallthru
          _
        // Predicated region
        $region25: #{tpu_custom_call.1} parent=15 // pred_check
          %p229 = pneg %p107
        $region26: #{tpu_custom_call.1} parent=15 // pred_check_branch
          %231 = sbr.rel (%p229) target = $region28
        $region27: #{tpu_custom_call.1} parent=15 // pred_region
          %s232 = sand.u32 %s19, 1
          %s233 = scalar_lea.sflag [#allocation10], %s232
          %s234 = sand.u32 %s97, 1
          %s235 = smul.addr %s234, 16
          %s236 = scalar_lea.vmem [#allocation11], %s235
          %s238 = ssub.s32 256, 256
          %239 = vsyncadd %s233, %s238
          %s240 = smul.addr %s26, 2
          %s241 = smul.addr %s240, 128
          %s242 = scalar_lea.hbm %s2, %s241
          %s243 = sshll.u32 %s236, 4
          %s244 = int_to_ptr.vmem [resolvable:$true] %s243
          %249 = dma.hbm_to_vmem [thread:$0]  %s242, 256, %s244, %s233, 128, 128, 8
        $region28: #{tpu_custom_call.1} parent=15 // pred_fallthru
          _
        // Predicated region
        $region29: #{tpu_custom_call.1} parent=15 // pred_check
          %p250 = pneg %p133
        $region30: #{tpu_custom_call.1} parent=15 // pred_check_branch
          %252 = sbr.rel (%p250) target = $region32
        $region31: #{tpu_custom_call.1} parent=15 // pred_region
          %p253 = scmp.lt.s32.totalorder %s26, 1
          %s254 = scalar_select %p253, %s26, 1
          %s255 = scalar_lea.vmem %s3, %s254
        $region32: #{tpu_custom_call.1} parent=15 // pred_fallthru
          _
      $region16: #{tpu_custom_call.1} parent=5 // pred_fallthru
        _
      %p256 = scmp.le.s32.totalorder 1, %s19
      %p257 = scmp.lt.s32.totalorder %s19, 3
      %p258 = pnand %p256, %p257
      %p259 = pneg %p258
      // Predicated region
      $region33: #{tpu_custom_call.1} parent=5 // pred_check
        _
      $region34: #{tpu_custom_call.1} parent=5 // pred_check_branch
        %261 = sbr.rel (%p258) target = $region36
      $region35: #{tpu_custom_call.1} parent=5 // pred_region
        %s262 = ssub.s32 %s19, 1
        %s263 = sand.u32 %s46, 1
        %s264 = scalar_lea.sflag [#allocation7], %s263
        %s265 = sand.u32 %s46, 1
        %s266 = smul.addr %s265, 8
        %s267 = scalar_lea.vmem [#allocation6], %s266
        // Predicated region
        $region37: #{tpu_custom_call.1} parent=35 // pred_check
          %p268 = pneg %p59
        $region38: #{tpu_custom_call.1} parent=35 // pred_check_branch
          %270 = sbr.rel (%p268) target = $region40
        $region39: #{tpu_custom_call.1} parent=35 // pred_region
          %271 = dma.done %s264, 128
        $region40: #{tpu_custom_call.1} parent=35 // pred_fallthru
          _
        %s272 = sand.u32 %s24, 1
        %s273 = scalar_lea.sflag [#allocation10], %s272
        %s274 = sand.u32 %s74, 1
        %s275 = smul.addr %s274, 64
        %s276 = scalar_lea.vmem [#allocation9], %s275
        // Predicated region
        $region41: #{tpu_custom_call.1} parent=35 // pred_check
          %p277 = pneg %p87
        $region42: #{tpu_custom_call.1} parent=35 // pred_check_branch
          %279 = sbr.rel (%p277) target = $region44
        $region43: #{tpu_custom_call.1} parent=35 // pred_region
          %280 = dma.done %s273, 1024
        $region44: #{tpu_custom_call.1} parent=35 // pred_fallthru
          _
        %s281 = sand.u32 %s24, 1
        %s282 = scalar_lea.sflag [#allocation10], %s281
        %s283 = sand.u32 %s100, 1
        %s284 = smul.addr %s283, 16
        %s285 = scalar_lea.vmem [#allocation11], %s284
        // Predicated region
        $region45: #{tpu_custom_call.1} parent=35 // pred_check
          %p286 = pneg %p113
        $region46: #{tpu_custom_call.1} parent=35 // pred_check_branch
          %288 = sbr.rel (%p286) target = $region48
        $region47: #{tpu_custom_call.1} parent=35 // pred_region
          %289 = dma.done %s282, 256
        $region48: #{tpu_custom_call.1} parent=35 // pred_fallthru
          _
        %s290 = sand.u32 %s46, 1
        %s291 = scalar_lea.sflag [#allocation7], %s290
        %s292 = sand.u32 %s46, 1
        %s293 = smul.addr %s292, 8
        %s294 = scalar_lea.vmem [#allocation6], %s293
        %p295 = pneg %p59
        %p296 = pneg %p56
        %s297 = sand.u32 %s24, 1
        %s298 = scalar_lea.sflag [#allocation10], %s297
        %s299 = sand.u32 %s74, 1
        %s300 = smul.addr %s299, 64
        %s301 = scalar_lea.vmem [#allocation9], %s300
        %p302 = pneg %p87
        %p303 = pneg %p84
        %s304 = sand.u32 %s24, 1
        %s305 = scalar_lea.sflag [#allocation10], %s304
        %s306 = sand.u32 %s100, 1
        %s307 = smul.addr %s306, 16
        %s308 = scalar_lea.vmem [#allocation11], %s307
        %p309 = pneg %p113
        %p310 = pneg %p110
        %p311 = scmp.lt.s32.totalorder %s28, 1
        %s312 = scalar_select %p311, %s28, 1
        %s313 = scalar_lea.vmem %s3, %s312
        %p314 = pneg %p139
        %p315 = pneg %p136
        %p316 = pneg %p165
        %p317 = pneg %p162
        %s318 = sand.u32 %s152, 1
        %s319 = scalar_lea.sflag [#allocation8], %s318
        %s320 = sand.u32 %s152, 1
        %s321 = smul.addr %s320, 16
        %s322 = scalar_lea.vmem [#allocation12], %s321
        %s323 = smul.u32 16, %s29
        %p324 = scmp.lt.s32.totalorder %s28, 1
        %s325 = scalar_select %p324, %s28, 1
        %s326 = scalar_lea.vmem %s3, %s325
        %p328 = scmp.eq.s32.totalorder %s29, 0
        // Predicated region
        $region49: #{tpu_custom_call.1} parent=35 // pred_check
          %p329 = pneg %p328
        $region50: #{tpu_custom_call.1} parent=35 // pred_check_branch
          %331 = sbr.rel (%p329) target = $region52
        $region51: #{tpu_custom_call.1} parent=35 // pred_region
          %332 = vst [vmem:[#allocation2] sm:$0xff] 0.0
          %333 = vst [vmem:[#allocation2 + $0x8] sm:$0xff] 0.0
          %334 = vst [vmem:[#allocation3] sm:$0xff] 0.0
          %335 = vst [vmem:[#allocation3 + $0x8] sm:$0xff] 0.0
          %vm336 = vcmask 7168
          %337 = vst.msk [vmem:[#allocation4] sm:$0xff] %vm336, 0.0
          %338 = vst.msk [vmem:[#allocation4 + $0x8] sm:$0xff] %vm336, 0.0
          %339 = vst.msk [vmem:[#allocation5] sm:$0xff] %vm336, 0.0
          %340 = vst.msk [vmem:[#allocation5 + $0x8] sm:$0xff] %vm336, 0.0
        $region52: #{tpu_custom_call.1} parent=35 // pred_fallthru
          _
        %v341 = vld [vmem:[%s267] sm:$0xf]
        %v342 = vld [vmem:[%s267 + $0x4] sm:$0xf]
        %v343 = vld [vmem:[%s276] sm:$0xf]
        %v344 = vld [vmem:[%s276 + $0x4] sm:$0xf]
        %v345 = vld [vmem:[%s276 + $0x8] sm:$0xf]
        %v346 = vld [vmem:[%s276 + $0xc] sm:$0xf]
        %v347 = vld [vmem:[%s276 + $0x10] sm:$0xf]
        %v348 = vld [vmem:[%s276 + $0x14] sm:$0xf]
        %v349 = vld [vmem:[%s276 + $0x18] sm:$0xf]
        %v350 = vld [vmem:[%s276 + $0x1c] sm:$0xf]
        %v351 = vld [vmem:[%s276 + $0x20] sm:$0xf]
        %v352 = vld [vmem:[%s276 + $0x24] sm:$0xf]
        %v353 = vld [vmem:[%s276 + $0x28] sm:$0xf]
        %v354 = vld [vmem:[%s276 + $0x2c] sm:$0xf]
        %v355 = vld [vmem:[%s276 + $0x30] sm:$0xf]
        %v356 = vld [vmem:[%s276 + $0x34] sm:$0xf]
        %v357 = vld [vmem:[%s276 + $0x38] sm:$0xf]
        %v358 = vld [vmem:[%s276 + $0x3c] sm:$0xf]
        %v359 = vunpack.c.l.bf16 %v341
        %v360 = vunpack.c.l.bf16 %v342
        %v361 = vand.u32 2147483647, %v359
        %v362 = vand.u32 2147483647, %v360
        %v363 = vsub.f32 0.0, %v361
        %v364 = vsub.f32 0.0, %v362
        %v365 = vmul.f32 %v363, 1.442695
        %v366 = vpow.pop %v365
        %v367 = vmul.f32 %v364, 1.442695
        %v368 = vpow.pop %v367
        %v369 = vmax.f32 %v359, 0.0
        %v370 = vmax.f32 %v360, 0.0
        %v371 = vadd.f32 %v366, 1.0
        %v372 = vlog2.pop %v371
        %v373 = vmul.f32 %v372, 0.6931472
        %v374 = vmul.f32 -0.5, %v366
        %v375 = vadd.f32 %v374, 1.0
        %v376 = vmul.f32 %v375, %v366
        %v377 = vand.u32 2147483647, %v366
        %vm378 = vcmp.lt.f32.partialorder %v377, 0.0004427343
        %v379 = vsel %vm378, %v376, %v373
        %v380 = vadd.f32 %v368, 1.0
        %v381 = vlog2.pop %v380
        %v382 = vmul.f32 %v381, 0.6931472
        %v383 = vmul.f32 -0.5, %v368
        %v384 = vadd.f32 %v383, 1.0
        %v385 = vmul.f32 %v384, %v368
        %v386 = vand.u32 2147483647, %v368
        %vm387 = vcmp.lt.f32.partialorder %v386, 0.0004427343
        %v388 = vsel %vm387, %v385, %v382
        %v389 = vadd.f32 %v369, %v379
        %v390 = vadd.f32 %v370, %v388
        %v391 = vadd.f32 %v366, 1.0
        %v392 = vadd.f32 %v368, 1.0
        %v393 = vrcp.pop %v391
        %v394 = vrcp.pop %v392
        %vm395 = vcmp.ge.f32.partialorder %v359, 0.0
        %vm396 = vcmp.ge.f32.partialorder %v360, 0.0
        %v397 = vsub.f32 1.0, %v393
        %v398 = vsub.f32 1.0, %v394
        %v399 = vsel %vm395, %v393, %v397
        %v400 = vsel %vm396, %v394, %v398
        %v401 = vld [vmem:[#allocation2] sm:$0xff]
        %v402 = vld [vmem:[#allocation2 + $0x8] sm:$0xff]
        %v405 = vunpack.c.l.b16 %v341
        %v406 = vunpack.c.l.b16 %v342
        %v407 = vpack.c.b16 %v406, %v405
        %v425 = vunpack.c.l.b16 %v343
        %v426 = vunpack.c.l.b16 %v344
        %v427 = vunpack.c.l.b16 %v345
        %v428 = vunpack.c.l.b16 %v346
        %v429 = vunpack.c.l.b16 %v347
        %v430 = vunpack.c.l.b16 %v348
        %v431 = vunpack.c.l.b16 %v349
        %v432 = vunpack.c.l.b16 %v350
        %v433 = vunpack.c.l.b16 %v351
        %v434 = vunpack.c.l.b16 %v352
        %v435 = vunpack.c.l.b16 %v353
        %v436 = vunpack.c.l.b16 %v354
        %v437 = vunpack.c.l.b16 %v355
        %v438 = vunpack.c.l.b16 %v356
        %v439 = vunpack.c.l.b16 %v357
        %v440 = vunpack.c.l.b16 %v358
        %v441 = vpack.c.b16 %v426, %v425
        %v442 = vpack.c.b16 %v428, %v427
        %v443 = vpack.c.b16 %v430, %v429
        %v444 = vpack.c.b16 %v432, %v431
        %v445 = vpack.c.b16 %v434, %v433
        %v446 = vpack.c.b16 %v436, %v435
        %v447 = vpack.c.b16 %v438, %v437
        %v448 = vpack.c.b16 %v440, %v439
        %457 = vmatprep.subr.bf16.mxu0 0
        %458 = vmatpush1.bf16.msra.mxu0 %v448
        %459 = vmatprep.subr.bf16.mxu0 0
        %460 = vmatpush1.bf16.msra.mxu0 %v447
        %461 = vmatprep.subr.bf16.mxu0 0
        %462 = vmatpush1.bf16.msra.mxu0 %v446
        %463 = vmatprep.subr.bf16.mxu0 0
        %464 = vmatpush1.bf16.msra.mxu0 %v445
        %465 = vmatprep.subr.bf16.mxu0 0
        %466 = vmatpush1.bf16.msra.mxu0 %v444
        %467 = vmatprep.subr.bf16.mxu0 0
        %468 = vmatpush1.bf16.msra.mxu0 %v443
        %469 = vmatprep.subr.bf16.mxu0 0
        %470 = vmatpush1.bf16.msra.mxu0 %v442
        %471 = vmatprep.subr.bf16.mxu0 0
        %472 = vmatpush1.bf16.msra.mxu0 %v441
        %473 = vmatprep.subr.bf16.mxu0 0
        %474 = vmatpush2.bf16.msra.mxu0 0
        %475 = vmatprep.subr.bf16.mxu0 0
        %476 = vmatpush2.bf16.msra.mxu0 0
        %477 = vmatprep.subr.bf16.mxu0 0
        %478 = vmatpush2.bf16.msra.mxu0 0
        %479 = vmatprep.subr.bf16.mxu0 0
        %480 = vmatpush2.bf16.msra.mxu0 0
        %481 = vmatprep.subr.bf16.mxu0 0
        %482 = vmatpush2.bf16.msra.mxu0 0
        %483 = vmatprep.subr.bf16.mxu0 0
        %484 = vmatpush2.bf16.msra.mxu0 0
        %485 = vmatprep.subr.bf16.mxu0 0
        %486 = vmatpush2.bf16.msra.mxu0 0
        %487 = vmatprep.subr.bf16.mxu0 0
        %488 = vmatpush2.bf16.msra.mxu0 0
        %489 = vmatprep.mubr.bf16.mxu0 0
        %490 = vmatmul.mubr.bf16.gmra.mxu0 %v407
        %v491 = vpop.f32.mrf.mxu0
        %v492 = vadd.f32 0.0, %v491
        %v493 = vpop.f32.mrf.mxu0
        %v494 = vpop.f32.mrf.mxu0
        %v495 = vadd.f32 0.0, %v494
        %v496 = vpop.f32.mrf.mxu0
        %497 = vdwg.mxu0
        %v498 = vadd.f32 %v401, %v492
        %v499 = vadd.f32 %v402, %v495
        %500 = vst [vmem:[#allocation2] sm:$0xff] %v498
        %501 = vst [vmem:[#allocation2 + $0x8] sm:$0xff] %v499
        %v502 = vld [vmem:[#allocation3] sm:$0xff]
        %v503 = vld [vmem:[#allocation3 + $0x8] sm:$0xff]
        %v504 = vpack.c.bf16 %v400, %v399
        %505 = vmatprep.subr.bf16.mxu0 0
        %506 = vmatpush1.bf16.msra.mxu0 %v448
        %507 = vmatprep.subr.bf16.mxu0 0
        %508 = vmatpush1.bf16.msra.mxu0 %v447
        %509 = vmatprep.subr.bf16.mxu0 0
        %510 = vmatpush1.bf16.msra.mxu0 %v446
        %511 = vmatprep.subr.bf16.mxu0 0
        %512 = vmatpush1.bf16.msra.mxu0 %v445
        %513 = vmatprep.subr.bf16.mxu0 0
        %514 = vmatpush1.bf16.msra.mxu0 %v444
        %515 = vmatprep.subr.bf16.mxu0 0
        %516 = vmatpush1.bf16.msra.mxu0 %v443
        %517 = vmatprep.subr.bf16.mxu0 0
        %518 = vmatpush1.bf16.msra.mxu0 %v442
        %519 = vmatprep.subr.bf16.mxu0 0
        %520 = vmatpush1.bf16.msra.mxu0 %v441
        %521 = vmatprep.subr.bf16.mxu0 0
        %522 = vmatpush2.bf16.msra.mxu0 0
        %523 = vmatprep.subr.bf16.mxu0 0
        %524 = vmatpush2.bf16.msra.mxu0 0
        %525 = vmatprep.subr.bf16.mxu0 0
        %526 = vmatpush2.bf16.msra.mxu0 0
        %527 = vmatprep.subr.bf16.mxu0 0
        %528 = vmatpush2.bf16.msra.mxu0 0
        %529 = vmatprep.subr.bf16.mxu0 0
        %530 = vmatpush2.bf16.msra.mxu0 0
        %531 = vmatprep.subr.bf16.mxu0 0
        %532 = vmatpush2.bf16.msra.mxu0 0
        %533 = vmatprep.subr.bf16.mxu0 0
        %534 = vmatpush2.bf16.msra.mxu0 0
        %535 = vmatprep.subr.bf16.mxu0 0
        %536 = vmatpush2.bf16.msra.mxu0 0
        %537 = vmatprep.mubr.bf16.mxu0 0
        %538 = vmatmul.mubr.bf16.gmra.mxu0 %v504
        %v539 = vpop.f32.mrf.mxu0
        %v540 = vadd.f32 0.0, %v539
        %v541 = vpop.f32.mrf.mxu0
        %v542 = vpop.f32.mrf.mxu0
        %v543 = vadd.f32 0.0, %v542
        %v544 = vpop.f32.mrf.mxu0
        %545 = vdwg.mxu0
        %v546 = vadd.f32 %v502, %v540
        %v547 = vadd.f32 %v503, %v543
        %548 = vst [vmem:[#allocation3] sm:$0xff] %v546
        %549 = vst [vmem:[#allocation3 + $0x8] sm:$0xff] %v547
        %v550 = vld [vmem:[#allocation4] sm:$0xff]
        %v551 = vld [vmem:[#allocation4 + $0x8] sm:$0xff]
        %552 = vadd.xlane.f32.xlu0 %v389
        %v553 = vpop.xlane.xlu0 %552
        %554 = vadd.xlane.f32.xlu0 %v390
        %v555 = vpop.xlane.xlu0 %554
        %v556 = vadd.f32 %v550, %v553
        %v557 = vadd.f32 %v551, %v555
        %vm558 = vcmask 7168
        %559 = vst.msk [vmem:[#allocation4] sm:$0xff] %vm558, %v556
        %560 = vst.msk [vmem:[#allocation4 + $0x8] sm:$0xff] %vm558, %v557
        %v561 = vld [vmem:[#allocation5] sm:$0xff]
        %v562 = vld [vmem:[#allocation5 + $0x8] sm:$0xff]
        %563 = vadd.xlane.f32.xlu0 %v399
        %v564 = vpop.xlane.xlu0 %563
        %565 = vadd.xlane.f32.xlu0 %v400
        %v566 = vpop.xlane.xlu0 %565
        %v567 = vadd.f32 %v561, %v564
        %v568 = vadd.f32 %v562, %v566
        %569 = vst.msk [vmem:[#allocation5] sm:$0xff] %vm558, %v567
        %570 = vst.msk [vmem:[#allocation5 + $0x8] sm:$0xff] %vm558, %v568
        // Predicated region
        $region53: #{tpu_custom_call.1} parent=35 // pred_check
          %p571 = pneg %p328
        $region54: #{tpu_custom_call.1} parent=35 // pred_check_branch
          %573 = sbr.rel (%p571) target = $region56
        $region55: #{tpu_custom_call.1} parent=35 // pred_region
          %v574 = vld [vmem:[#allocation4] sm:$0xff]
          %v575 = vld [vmem:[#allocation4 + $0x8] sm:$0xff]
          %v576 = vld [vmem:[#allocation2] sm:$0xff]
          %v577 = vld [vmem:[#allocation2 + $0x8] sm:$0xff]
          %579 = vset.pattern.permute.xlu0 0
          %580 = vperm.xlu0 %579, %v574
          %v581 = vpop.permute.xlu0 %580
          %584 = vset.pattern.permute.xlu0 0
          %585 = vperm.xlu0 %584, %v575
          %v586 = vpop.permute.xlu0 %585
          %v588 = vsub.f32 %v581, %v576
          %v589 = vsub.f32 %v586, %v577
          %v590 = vmul.f32 %v588, 0.0078125
          %v591 = vmul.f32 %v589, 0.0078125
          %v592 = vld [vmem:[#allocation5] sm:$0xff]
          %v593 = vld [vmem:[#allocation5 + $0x8] sm:$0xff]
          %v594 = vld [vmem:[%s326] sm:$0x1]
          %596 = vset.pattern.permute.xlu0 0
          %597 = vperm.xlu0 %596, %v592
          %v598 = vpop.permute.xlu0 %597
          %601 = vset.pattern.permute.xlu0 0
          %602 = vperm.xlu0 %601, %v593
          %v603 = vpop.permute.xlu0 %602
          %v606 = vlaneseq
          %v607 = vshrl.u32 %v606, 7
          %v608 = vsub.s32 0, %v607
          %v609 = vrot.slane %v594, %v608
          %v611 = vadd.f32 %v598, %v609
          %v612 = vadd.f32 %v603, %v609
          %v613 = vadd.f32 %v611, 1.0
          %v614 = vadd.f32 %v612, 1.0
          %v615 = vld [vmem:[#allocation3] sm:$0xff]
          %v616 = vld [vmem:[#allocation3 + $0x8] sm:$0xff]
          %v617 = vmul.f32 %v615, 2.0
          %v618 = vmul.f32 %v616, 2.0
          %v619 = vadd.f32 %v617, 1.0
          %v620 = vadd.f32 %v618, 1.0
          %v621 = vrcp.pop %v613
          %v622 = vmul.f32 %v619, %v621
          %v623 = vrcp.pop %v614
          %v624 = vmul.f32 %v620, %v623
          %v625 = vsub.f32 1.0, %v622
          %v626 = vsub.f32 1.0, %v624
          %v627 = vld [vmem:[%s285] sm:$0xff]
          %v628 = vld [vmem:[%s285 + $0x8] sm:$0xff]
          %v629 = vadd.f32 %v590, %v627
          %v630 = vadd.f32 %v591, %v628
          %v631 = vadd.f32 %v629, %v625
          %v632 = vadd.f32 %v630, %v626
          %v633 = vmax.f32 %v631, -1e+10
          %v634 = vmax.f32 %v632, -1e+10
          %v635 = vmin.f32 %v633, 1e+10
          %v636 = vmin.f32 %v634, 1e+10
          %637 = vst [vmem:[%s322] sm:$0xff] %v635
          %638 = vst [vmem:[%s322 + $0x8] sm:$0xff] %v636
        $region56: #{tpu_custom_call.1} parent=35 // pred_fallthru
          _
        %s639 = sand.u32 %s152, 1
        %s640 = scalar_lea.sflag [#allocation8], %s639
        %s641 = sand.u32 %s152, 1
        %s642 = smul.addr %s641, 16
        %s643 = scalar_lea.vmem [#allocation12], %s642
        // Predicated region
        $region57: #{tpu_custom_call.1} parent=35 // pred_check
          %p644 = pneg %p162
        $region58: #{tpu_custom_call.1} parent=35 // pred_check_branch
          %646 = sbr.rel (%p644) target = $region60
        $region59: #{tpu_custom_call.1} parent=35 // pred_region
          %s648 = ssub.s32 256, 256
          %649 = vsyncadd %s640, %s648
          %s650 = smul.addr %s28, 2
          %s651 = smul.addr %s650, 128
          %s652 = scalar_lea.hbm %s4, %s651
          %s653 = sshll.u32 %s643, 4
          %s654 = int_to_ptr.vmem [resolvable:$true] %s653
          %659 = dma.vmem_to_hbm [thread:$0]  %s654, 256, %s652, %s640, 128, 128, 8
        $region60: #{tpu_custom_call.1} parent=35 // pred_fallthru
          _
      $region36: #{tpu_custom_call.1} parent=5 // pred_fallthru
        _
      %p660 = scmp.le.s32.totalorder 2, %s19
      // Predicated region
      $region61: #{tpu_custom_call.1} parent=5 // pred_check
        %p661 = pneg %p660
      $region62: #{tpu_custom_call.1} parent=5 // pred_check_branch
        %663 = sbr.rel (%p661) target = $region64
      $region63: #{tpu_custom_call.1} parent=5 // pred_region
        %s664 = ssub.s32 %s19, 2
        // Predicated region
        $region65: #{tpu_custom_call.1} parent=63 // pred_check
          %p665 = pneg %p168
        $region66: #{tpu_custom_call.1} parent=63 // pred_check_branch
          %667 = sbr.rel (%p665) target = $region68
        $region67: #{tpu_custom_call.1} parent=63 // pred_region
          %s668 = sand.u32 %s153, 1
          %s669 = scalar_lea.sflag [#allocation8], %s668
          %s670 = sand.u32 %s153, 1
          %s671 = smul.addr %s670, 16
          %s672 = scalar_lea.vmem [#allocation12], %s671
          %673 = dma.done %s669, 256
        $region68: #{tpu_custom_call.1} parent=63 // pred_fallthru
          _
      $region64: #{tpu_custom_call.1} parent=5 // pred_fallthru
        _
    $region6: #{tpu_custom_call.1} parent=1 // loop_footer
      %s23 = sadd.s32 1, %s19
    $region7: #{tpu_custom_call.1} parent=1 // loop_footer_branch
      %18 = sbr.rel target = $region3
    $region8: #{tpu_custom_call.1} parent=1 // loop_exit
      _
    %674 = vsyncpa [#allocation7], 1
    %s675 = scalar_lea.sflag [#allocation7], 1
    %676 = vsyncpa %s675, 1
    %677 = vsyncpa [#allocation10], 1
    %s678 = scalar_lea.sflag [#allocation10], 1
    %679 = vsyncpa %s678, 1
    %680 = vsyncpa [#allocation8], 1
    %s681 = scalar_lea.sflag [#allocation8], 1
    %682 = vsyncpa %s681, 1

</llo_original>
